<compile_context>
chip_gen: v7x
topology: tpu7x:2x2x1
jax: 0.10.0
libtpu: 0.0.40
codegen_flags: <defaults>
</compile_context>

<pallas_src>
import math

import jax
import jax.numpy as jnp
from jax.experimental import pallas as pl
from jax.experimental.pallas import tpu as pltpu


# ---------------------------------------------------------------------------
# Kernels. The output tile (block index (i, j) constant across the k axis)
# stays resident in VMEM across the K reduction and is used directly as the
# f32 accumulator -- no scratch buffer, no finalize copy.
# ---------------------------------------------------------------------------
def _kp_linear_kernel_bias(x_ref, w_ref, b_ref, o_ref):
    @pl.when(pl.program_id(2) == 0)
    def _init():
        # Fold the bias into the accumulator init.
        o_ref[...] = jnp.broadcast_to(b_ref[...], o_ref.shape)

    o_ref[...] += jnp.dot(x_ref[...], w_ref[...],
                          preferred_element_type=jnp.float32)


def _kp_linear_kernel_nobias(x_ref, w_ref, o_ref):
    @pl.when(pl.program_id(2) == 0)
    def _init():
        o_ref[...] = jnp.zeros_like(o_ref)

    o_ref[...] += jnp.dot(x_ref[...], w_ref[...],
                          preferred_element_type=jnp.float32)


# ---------------------------------------------------------------------------
# Helpers.
# ---------------------------------------------------------------------------
def _round_up(x, m):
    return ((x + m - 1) // m) * m


def _pick_tile(dim, candidates, fallback):
    for c in candidates:
        if dim >= c and dim % c == 0:
            return c
    return fallback


_K_RESIDENT_MAX = 2048   # keep the whole K dim per tile up to this size
_K_STREAM_ALIGN = 512    # otherwise zero-pad K to a multiple of this & stream


def _pad_k(in_features):
    if in_features <= _K_RESIDENT_MAX:
        return in_features
    return _round_up(in_features, _K_STREAM_ALIGN)


def _tpu_config():
    """Generation-aware lane padding, VMEM budget and default M tile."""
    kind = ""
    try:
        kind = (getattr(jax.devices()[0], "device_kind", "") or "").lower()
    except Exception:
        pass
    if "v7" in kind:
        # 64 MiB VMEM per TensorCore, 2x256^2 MXU, 3.2 TB/s HBM.
        return {"lane_mult": 256, "vmem_budget": 40 << 20, "tm_default": 384}
    if "v6" in kind:
        # 128 MiB VMEM, 2x256^2 MXU.
        return {"lane_mult": 256, "vmem_budget": 96 << 20, "tm_default": 512}
    if "v5 lite" in kind or "v5lite" in kind or "v5e" in kind:
        # 128 MiB VMEM, 4x128^2 MXU, most HBM-bound of the three.
        return {"lane_mult": 128, "vmem_budget": 96 << 20, "tm_default": 512}
    # v4 / v5p / unknown: conservative defaults that are safe everywhere.
    return {"lane_mult": 128, "vmem_budget": 48 << 20, "tm_default": 256}


def _select_tiles(M, K_pad, N_pad, x_isize, w_isize, cfg, sub):
    """Pick (tm, tk, tn) and return the estimated VMEM footprint in bytes."""
    budget = cfg["vmem_budget"]

    def est_bytes(tm, tk, tn):
        return (2 * tm * tk * x_isize      # x tiles (double-buffered)
                + 2 * tk * tn * w_isize    # weight tiles (double-buffered)
                + 2 * tn * 4               # bias tile
                + 2 * tm * tn * 4)         # output tiles (double-buffered)

    def fit_tm(tk, tn):
        tm = min(cfg["tm_default"], _round_up(M, sub))
        tm = max(sub, _round_up(tm, sub))
        while tm > sub and est_bytes(tm, tk, tn) > budget:
            tm = max(sub, _round_up(tm // 2, sub))
        return tm

    # Weight-resident fast path: whole (K_pad, N_pad) weight stays in VMEM.
    # Its block index is constant over the grid so it is DMA'd exactly once;
    # the grid then only sweeps M (no per-M-tile weight re-stream).
    if 2 * K_pad * N_pad * w_isize <= (2 * budget) // 3:
        tk, tn = K_pad, N_pad
        tm = fit_tm(tk, tn)
        if est_bytes(tm, tk, tn) <= budget:
            return tm, tk, tn, est_bytes(tm, tk, tn)

    # Streaming path.
    tn_cands = (512, 256) if cfg["lane_mult"] >= 256 else (512, 256, 128)
    tn = _pick_tile(N_pad, tn_cands, cfg["lane_mult"])
    if K_pad <= _K_RESIDENT_MAX:
        tk = K_pad
    else:
        tk = _pick_tile(K_pad, (2048, 1024, 512), _K_STREAM_ALIGN)
    tm = fit_tm(tk, tn)
    return tm, tk, tn, est_bytes(tm, tk, tn)


# ---------------------------------------------------------------------------
# Parameter preparation (hoisted out of the per-call path).
# ---------------------------------------------------------------------------
def prepare_kp_linear_params(weight, bias=None, *, operand_dtype=None):
    """Transpose + pad the weight once; cast/pad the bias once.

    Returns (w_t, b2, out_features) where w_t is (K_pad, N_pad) and b2 is
    (1, N_pad) float32 or None.
    """
    out_features, in_features = weight.shape
    cfg = _tpu_config()

    K_pad = _pad_k(in_features)
    N_pad = _round_up(max(out_features, cfg["lane_mult"]), cfg["lane_mult"])

    w_t = weight.T  # (K, N)
    if operand_dtype is not None and w_t.dtype != operand_dtype:
        w_t = w_t.astype(operand_dtype)
    if (K_pad, N_pad) != (in_features, out_features):
        w_t = jnp.pad(w_t, ((0, K_pad - in_features), (0, N_pad - out_features)))

    b2 = None
    if bias is not None:
        b2 = bias.astype(jnp.float32).reshape(1, out_features)
        if N_pad != out_features:
            b2 = jnp.pad(b2, ((0, 0), (0, N_pad - out_features)))

    return w_t, b2, out_features


# ---------------------------------------------------------------------------
# Forward pass.
# ---------------------------------------------------------------------------
def kp_linear_prepared(x, w_t, b2, out_features, *, operand_dtype=None):
    """y = x @ W^T + b with pre-transposed / pre-padded parameters."""
    in_features = x.shape[-1]
    K_pad, N_pad = w_t.shape
    assert K_pad >= in_features

    orig_shape = x.shape
    x_flat = x.reshape(-1, in_features)
    if operand_dtype is not None and x_flat.dtype != operand_dtype:
        x_flat = x_flat.astype(operand_dtype)
    if K_pad != in_features:
        # Zero padding along K is exact for a matmul.
        x_flat = jnp.pad(x_flat, ((0, 0), (0, K_pad - in_features)))
    M = x_flat.shape[0]

    cfg = _tpu_config()
    x_isize = x_flat.dtype.itemsize
    w_isize = w_t.dtype.itemsize
    sub = max(8, 32 // x_isize)  # sublane pack multiple (8 f32, 16 bf16, 32 i8)

    tm, tk, tn, est = _select_tiles(M, K_pad, N_pad, x_isize, w_isize, cfg, sub)

    grid = (pl.cdiv(M, tm), N_pad // tn, K_pad // tk)

    vmem_limit = int(min(max(int(est * 1.5), 32 << 20), cfg["vmem_budget"]))

    cost = pl.CostEstimate(
        flops=2 * M * K_pad * N_pad,
        transcendentals=0,
        bytes_accessed=int(M * K_pad * x_isize + K_pad * N_pad * w_isize
                           + M * N_pad * 4 + N_pad * 4),
    )

    in_specs = [pl.BlockSpec((tm, tk), lambda i, j, k: (i, k)),
                pl.BlockSpec((tk, tn), lambda i, j, k: (k, j))]
    operands = [x_flat, w_t]
    if b2 is not None:
        in_specs.append(pl.BlockSpec((1, tn), lambda i, j, k: (0, j)))
        operands.append(b2)
        kernel = _kp_linear_kernel_bias
    else:
        kernel = _kp_linear_kernel_nobias

    grid_spec = pltpu.PrefetchScalarGridSpec(
        num_scalar_prefetch=0,
        grid=grid,
        in_specs=in_specs,
        out_specs=pl.BlockSpec((tm, tn), lambda i, j, k: (i, j)),
    )

    out_flat = pl.pallas_call(
        kernel,
        out_shape=jax.ShapeDtypeStruct((M, N_pad), jnp.float32),
        grid_spec=grid_spec,
        compiler_params=pltpu.CompilerParams(
            dimension_semantics=("parallel", "parallel", "arbitrary"),
            vmem_limit_bytes=vmem_limit,
        ),
        cost_estimate=cost,
    )(*operands)

    if N_pad != out_features:
        out_flat = out_flat[:, :out_features]
    return out_flat.reshape(*orig_shape[:-1], out_features)


def kp_linear(x, weight, bias=None, *, operand_dtype=None):
    """Convenience path: prepares parameters and runs the forward pass.

    For repeated forwards with the same weights, call
    prepare_kp_linear_params() once and use kp_linear_prepared().
    """
    w_t, b2, out_features = prepare_kp_linear_params(
        weight, bias, operand_dtype=operand_dtype)
    return kp_linear_prepared(x, w_t, b2, out_features,
                              operand_dtype=operand_dtype)


def init_kp_linear_params(key, in_features, out_features, use_bias=True):
    """Deterministic init mirroring kpLinear.reset_parameters (kaiming_uniform a=sqrt(5))."""
    kw, kb = jax.random.split(key)
    # kaiming_uniform_ with a=sqrt(5) -> bound = 1/sqrt(fan_in)
    fan_in = in_features
    w_bound = 1.0 / math.sqrt(fan_in)
    weight = jax.random.uniform(
        kw, (out_features, in_features), jnp.float32, -w_bound, w_bound
    )
    bias = None
    if use_bias:
        b_bound = 1.0 / math.sqrt(fan_in)
        bias = jax.random.uniform(kb, (out_features,), jnp.float32, -b_bound, b_bound)
    return weight, bias


if __name__ == "__main__":
    key = jax.random.PRNGKey(0)
    k_x, k_p = jax.random.split(key)

    batch, seq, in_features, out_features = 2, 8, 32, 64
    x = jax.random.normal(k_x, (batch, seq, in_features), dtype=jnp.float32)
    weight, bias = init_kp_linear_params(k_p, in_features, out_features, use_bias=True)

    # Hoist the weight transpose / pad and bias cast out of the per-call path.
    w_t, b2, n_out = prepare_kp_linear_params(weight, bias)

    out = kp_linear_prepared(x, w_t, b2, n_out)
    out = jax.block_until_ready(out)

    # Pure-JAX reference check (bias path).
    ref = (x.reshape(-1, in_features) @ weight.T + bias).reshape(
        batch, seq, out_features
    )
    assert out.shape == (batch, seq, out_features)
    assert out.dtype == jnp.float32
    assert jnp.allclose(out, ref, atol=1e-4, rtol=1e-4)

    # Also exercise the bias-free convenience path once.
    out_nb = jax.block_until_ready(kp_linear(x, weight, None))
    ref_nb = (x.reshape(-1, in_features) @ weight.T).reshape(batch, seq, out_features)
    assert jnp.allclose(out_nb, ref_nb, atol=1e-4, rtol=1e-4)

    print("KERNEL_OK")
</pallas_src>

<mosaic_0001>
module attributes {stable_mosaic.version = 11 : i64} {
  func.func @_kp_linear_kernel_bias(%arg0: i32, %arg1: i32, %arg2: i32, %arg3: memref<16x32xf32, #tpu.memory_space<vmem>>, %arg4: memref<32x128xf32, #tpu.memory_space<vmem>>, %arg5: memref<1x128xf32, #tpu.memory_space<vmem>>, %arg6: memref<16x128xf32, #tpu.memory_space<vmem>>) attributes {dimension_semantics = [#tpu.dimension_semantics<parallel>, #tpu.dimension_semantics<parallel>, #tpu.dimension_semantics<arbitrary>], iteration_bounds = array<i64: 1, 1, 1>, scalar_prefetch = 0 : i64, scratch_operands = 0 : i64, tpu.core_type = #tpu.core_type<tc>, window_params = [{transform_indices = @transform_0, window_bounds = array<i64: 16, 32>}, {transform_indices = @transform_1, window_bounds = array<i64: 32, 128>}, {transform_indices = @transform_2, window_bounds = array<i64: 1, 128>}, {transform_indices = @transform_3, window_bounds = array<i64: 16, 128>}]} {
    %c0_i32 = arith.constant 0 : i32
    %0 = arith.cmpi eq, %arg2, %c0_i32 : i32
    %1 = arith.extui %0 : i1 to i32
    %c0_i32_0 = arith.constant 0 : i32
    %2 = arith.cmpi ne, %1, %c0_i32_0 : i32
    scf.if %2 {
      %c0_8 = arith.constant 0 : index
      %c0_9 = arith.constant 0 : index
      %9 = vector.load %arg5[%c0_8, %c0_9] : memref<1x128xf32, #tpu.memory_space<vmem>>, vector<1x128xf32>
      %10 = vector.shape_cast %9 : vector<1x128xf32> to vector<1x128xf32>
      %11 = vector.broadcast %10 : vector<1x128xf32> to vector<16x128xf32>
      %c0_10 = arith.constant 0 : index
      %c0_11 = arith.constant 0 : index
      %12 = vector.load %arg6[%c0_10, %c0_11] : memref<16x128xf32, #tpu.memory_space<vmem>>, vector<16x128xf32>
      tpu.vector_store %arg6[%c0_10, %c0_11], %11 {strides = array<i32>} : memref<16x128xf32, #tpu.memory_space<vmem>>, vector<16x128xf32>,
    } else {
    }
    %c0 = arith.constant 0 : index
    %c0_1 = arith.constant 0 : index
    %3 = vector.load %arg6[%c0, %c0_1] : memref<16x128xf32, #tpu.memory_space<vmem>>, vector<16x128xf32>
    %c0_2 = arith.constant 0 : index
    %c0_3 = arith.constant 0 : index
    %4 = vector.load %arg3[%c0_2, %c0_3] : memref<16x32xf32, #tpu.memory_space<vmem>>, vector<16x32xf32>
    %c0_4 = arith.constant 0 : index
    %c0_5 = arith.constant 0 : index
    %5 = vector.load %arg4[%c0_4, %c0_5] : memref<32x128xf32, #tpu.memory_space<vmem>>, vector<32x128xf32>
    %cst = arith.constant dense<0.000000e+00> : vector<16x128xf32>
    %6 = tpu.matmul %4, %5, %cst {dimension_numbers = #tpu.dot_dimension_numbers<[1], [0], [0], [1], [0, 0, 1, 1], [], []>} : vector<16x32xf32>, vector<32x128xf32>, vector<16x128xf32> -> vector<16x128xf32>
    %7 = arith.addf %3, %6 : vector<16x128xf32>
    %c0_6 = arith.constant 0 : index
    %c0_7 = arith.constant 0 : index
    %8 = vector.load %arg6[%c0_6, %c0_7] : memref<16x128xf32, #tpu.memory_space<vmem>>, vector<16x128xf32>
    tpu.vector_store %arg6[%c0_6, %c0_7], %7 {strides = array<i32>} : memref<16x128xf32, #tpu.memory_space<vmem>>, vector<16x128xf32>,
    return
  }
  func.func @transform_0(%arg0: i32, %arg1: i32, %arg2: i32) -> (i32, i32) {
    %c0_i32 = arith.constant 0 : i32
    return %arg0, %arg2 : i32, i32
  }
  func.func @transform_1(%arg0: i32, %arg1: i32, %arg2: i32) -> (i32, i32) {
    %c0_i32 = arith.constant 0 : i32
    return %arg2, %arg1 : i32, i32
  }
  func.func @transform_2(%arg0: i32, %arg1: i32, %arg2: i32) -> (i32, i32) {
    %c0_i32 = arith.constant 0 : i32
    %c0_i32_0 = arith.constant 0 : i32
    return %c0_i32, %arg1 : i32, i32
  }
  func.func @transform_3(%arg0: i32, %arg1: i32, %arg2: i32) -> (i32, i32) {
    %c0_i32 = arith.constant 0 : i32
    return %arg0, %arg1 : i32, i32
  }
}

</mosaic_0001>

<llo_original>
// kernel: tpu_custom_call.1
$region0: #{tpu_custom_call.1}
  #allocation0 [shape = 'u32[]', space=smem, size = 0x4, offset = 0x4, fixed_abs, tag = 'smem constant byte address 0x4 - core index']
  #allocation1 [shape = 'u32[144,128]{1,0:T(1,128)}', space=vmem, size = 0x12000, scoped, tag = 'internal scratch']
  %s0 = inlined_call_operand.hbm [shape: f32[16,32], index: 0, kind: input, shape index: {}]
  %s1 = inlined_call_operand.hbm [shape: f32[32,128], index: 1, kind: input, shape index: {}]
  %s2 = inlined_call_operand.vmem [shape: f32[1,128], index: 2, kind: input, shape index: {}]
  %s3 = inlined_call_operand.hbm [shape: f32[16,128], index: 3, kind: output, shape index: {}]
  %s4 = sld [smem:[#allocation0]]
  $region34: #{tpu_custom_call.1} parent=0
    _
  %s6 = ssub.s32 1, %s4
  %s7 = scalar_select 0, %s6, %s4
  $region1: #{tpu_custom_call.1} parent=0
    #allocation2 [shape = 'u8[8192]{0}', space=vmem, size = 0x2000, scoped, tag = 'input window, operand 0, single buffered']
    #allocation3 [shape = 's32[1]{0}', space=sflag, size = 0x4, scoped, tag = 'scoped memory for tpu_custom_call.1']
    #allocation4 [shape = 's32[1]{0}', space=sflag, size = 0x4, scoped, tag = 'scoped memory for tpu_custom_call.1']
    #allocation5 [shape = 'u8[16384]{0}', space=vmem, size = 0x4000, scoped, tag = 'input window, operand 1, single buffered']
    #allocation6 [shape = 's32[1]{0}', space=sflag, size = 0x4, scoped, tag = 'scoped memory for tpu_custom_call.1']
    #allocation7 [shape = 'u8[8192]{0}', space=vmem, size = 0x2000, scoped, tag = 'output window, operand 0, single buffered']
    %8 = vsyncpa [#allocation3], 0
    %9 = vsyncpa [#allocation6], 0
    %10 = vsyncpa [#allocation4], 0
    // Predicated region
    $region2: #{tpu_custom_call.1} parent=1 // pred_check
      _
    $region3: #{tpu_custom_call.1} parent=1 // pred_check_branch
      %12 = sbr.rel (0) target = $region5
    $region4: #{tpu_custom_call.1} parent=1 // pred_region
      %s14 = ssub.s32 256, 256
      %15 = vsyncadd [#allocation3], %s14
      %s16 = sshll.u32 [#allocation2], 4
      %s17 = int_to_ptr.vmem [resolvable:$true] %s16
      %22 = dma.hbm_to_vmem [thread:$0]  %s0, 256, %s17, [#allocation3], 128, 128, 8
    $region5: #{tpu_custom_call.1} parent=1 // pred_fallthru
      _
    // Predicated region
    $region6: #{tpu_custom_call.1} parent=1 // pred_check
      _
    $region7: #{tpu_custom_call.1} parent=1 // pred_check_branch
      %24 = sbr.rel (0) target = $region9
    $region8: #{tpu_custom_call.1} parent=1 // pred_region
      %s26 = ssub.s32 512, 512
      %27 = vsyncadd [#allocation6], %s26
      %s28 = sshll.u32 [#allocation5], 4
      %s29 = int_to_ptr.vmem [resolvable:$true] %s28
      %34 = dma.hbm_to_vmem [thread:$0]  %s1, 512, %s29, [#allocation6], 128, 128, 8
    $region9: #{tpu_custom_call.1} parent=1 // pred_fallthru
      _
    // Predicated region
    $region10: #{tpu_custom_call.1} parent=1 // pred_check
      _
    $region11: #{tpu_custom_call.1} parent=1 // pred_check_branch
      %36 = sbr.rel (0) target = $region13
    $region12: #{tpu_custom_call.1} parent=1 // pred_region
      _
    $region13: #{tpu_custom_call.1} parent=1 // pred_fallthru
      _
    // Predicated region
    $region14: #{tpu_custom_call.1} parent=1 // pred_check
      _
    $region15: #{tpu_custom_call.1} parent=1 // pred_check_branch
      %38 = sbr.rel (0) target = $region17
    $region16: #{tpu_custom_call.1} parent=1 // pred_region
      %39 = dma.done [#allocation3], 256
    $region17: #{tpu_custom_call.1} parent=1 // pred_fallthru
      _
    // Predicated region
    $region18: #{tpu_custom_call.1} parent=1 // pred_check
      _
    $region19: #{tpu_custom_call.1} parent=1 // pred_check_branch
      %41 = sbr.rel (0) target = $region21
    $region20: #{tpu_custom_call.1} parent=1 // pred_region
      %42 = dma.done [#allocation6], 512
    $region21: #{tpu_custom_call.1} parent=1 // pred_fallthru
      _
    %p43 = scmp.eq.s32.totalorder 0, 0
    // Predicated region
    $region22: #{tpu_custom_call.1} parent=1 // pred_check
      %p44 = pneg %p43
    $region23: #{tpu_custom_call.1} parent=1 // pred_check_branch
      %46 = sbr.rel (%p44) target = $region25
    $region24: #{tpu_custom_call.1} parent=1 // pred_region
      %v47 = vld [vmem:[%s2] sm:$0x1]
      %v49 = vlaneseq
      %v50 = vshrl.u32 %v49, 7
      %v51 = vsub.s32 0, %v50
      %v52 = vrot.slane %v47, %v51
      %54 = vst [vmem:[#allocation7] sm:$0xff] %v52
      %55 = vst [vmem:[#allocation7 + $0x8] sm:$0xff] %v52
    $region25: #{tpu_custom_call.1} parent=1 // pred_fallthru
      _
    %v56 = vld [vmem:[#allocation7] sm:$0xff]
    %v57 = vld [vmem:[#allocation7 + $0x8] sm:$0xff]
    %v58 = vld [vmem:[#allocation2] sm:$0xff]
    %v59 = vld [vmem:[#allocation2 + $0x8] sm:$0xff]
    %v60 = vld [vmem:[#allocation5] sm:$0xff]
    %v61 = vld [vmem:[#allocation5 + $0x8] sm:$0xff]
    %v62 = vld [vmem:[#allocation5 + $0x10] sm:$0xff]
    %v63 = vld [vmem:[#allocation5 + $0x18] sm:$0xff]
    %vm64 = vcmask 261120
    %v66 = vsel %vm64, %v58, 0
    %v69 = vsel %vm64, %v59, 0
    %71 = vmatprep.subr.mxu0 0.0
    %72 = vmatpush1.msra.mxu0 %v60
    %73 = vmatprep.subr.mxu0 0.0
    %74 = vmatpush1.msra.mxu0 %v61
    %75 = vmatprep.subr.mxu0 0.0
    %76 = vmatpush1.msra.mxu0 %v62
    %77 = vmatprep.subr.mxu0 0.0
    %78 = vmatpush1.msra.mxu0 %v63
    %79 = vmatprep.subr.mxu0 0.0
    %80 = vmatpush1.msra.mxu0 0.0
    %81 = vmatprep.subr.mxu0 0.0
    %82 = vmatpush1.msra.mxu0 0.0
    %83 = vmatprep.subr.mxu0 0.0
    %84 = vmatpush1.msra.mxu0 0.0
    %85 = vmatprep.subr.mxu0 0.0
    %86 = vmatpush1.msra.mxu0 0.0
    %87 = vmatprep.subr.mxu0 0.0
    %88 = vmatpush1.msra.mxu0 0.0
    %89 = vmatprep.subr.mxu0 0.0
    %90 = vmatpush1.msra.mxu0 0.0
    %91 = vmatprep.subr.mxu0 0.0
    %92 = vmatpush1.msra.mxu0 0.0
    %93 = vmatprep.subr.mxu0 0.0
    %94 = vmatpush1.msra.mxu0 0.0
    %95 = vmatprep.subr.mxu0 0.0
    %96 = vmatpush1.msra.mxu0 0.0
    %97 = vmatprep.subr.mxu0 0.0
    %98 = vmatpush1.msra.mxu0 0.0
    %99 = vmatprep.subr.mxu0 0.0
    %100 = vmatpush1.msra.mxu0 0.0
    %101 = vmatprep.subr.mxu0 0.0
    %102 = vmatpush1.msra.mxu0 0.0
    %103 = vmatprep.subr.mxu0 0.0
    %104 = vmatpush1.msra.mxu0 0.0
    %105 = vmatprep.subr.mxu0 0.0
    %106 = vmatpush1.msra.mxu0 0.0
    %107 = vmatprep.subr.mxu0 0.0
    %108 = vmatpush1.msra.mxu0 0.0
    %109 = vmatprep.subr.mxu0 0.0
    %110 = vmatpush1.msra.mxu0 0.0
    %111 = vmatprep.subr.mxu0 0.0
    %112 = vmatpush1.msra.mxu0 0.0
    %113 = vmatprep.subr.mxu0 0.0
    %114 = vmatpush1.msra.mxu0 0.0
    %115 = vmatprep.subr.mxu0 0.0
    %116 = vmatpush1.msra.mxu0 0.0
    %117 = vmatprep.subr.mxu0 0.0
    %118 = vmatpush1.msra.mxu0 0.0
    %119 = vmatprep.subr.mxu0 0.0
    %120 = vmatpush1.msra.mxu0 0.0
    %121 = vmatprep.subr.mxu0 0.0
    %122 = vmatpush1.msra.mxu0 0.0
    %123 = vmatprep.subr.mxu0 0.0
    %124 = vmatpush1.msra.mxu0 0.0
    %125 = vmatprep.subr.mxu0 0.0
    %126 = vmatpush1.msra.mxu0 0.0
    %127 = vmatprep.subr.mxu0 0.0
    %128 = vmatpush1.msra.mxu0 0.0
    %129 = vmatprep.subr.mxu0 0.0
    %130 = vmatpush1.msra.mxu0 0.0
    %131 = vmatprep.subr.mxu0 0.0
    %132 = vmatpush1.msra.mxu0 0.0
    %133 = vmatprep.subr.mxu0 0.0
    %134 = vmatpush1.msra.mxu0 0.0
    %135 = vmatprep.mubr.f32.mxu0 0.0
    %136 = vmatmul.mubr.f32.gmra.mrb[0].mxu0 %v66
    %v137 = vpop.f32.mrb[0].mxu0
    %v138 = vadd.f32 0.0, %v137
    %v139 = vpop.f32.mrb[0].mxu0
    %140 = vmatprep.mubr.f32.mxu0 0.0
    %141 = vmatmul.mubr.f32.gmra.mrb[0].mxu0 %v69
    %v142 = vpop.f32.mrb[0].mxu0
    %v143 = vadd.f32 0.0, %v142
    %v144 = vpop.f32.mrb[0].mxu0
    %145 = vdwg.mxu0
    %v146 = vadd.f32 %v56, %v138
    %v147 = vadd.f32 %v57, %v143
    %148 = vst [vmem:[#allocation7] sm:$0xff] %v146
    %149 = vst [vmem:[#allocation7 + $0x8] sm:$0xff] %v147
    // Predicated region
    $region26: #{tpu_custom_call.1} parent=1 // pred_check
      _
    $region27: #{tpu_custom_call.1} parent=1 // pred_check_branch
      %151 = sbr.rel (0) target = $region29
    $region28: #{tpu_custom_call.1} parent=1 // pred_region
      %s153 = ssub.s32 256, 256
      %154 = vsyncadd [#allocation4], %s153
      %s155 = sshll.u32 [#allocation7], 4
      %s156 = int_to_ptr.vmem [resolvable:$true] %s155
      %161 = dma.vmem_to_hbm [thread:$0]  %s156, 256, %s3, [#allocation4], 128, 128, 8
    $region29: #{tpu_custom_call.1} parent=1 // pred_fallthru
      _
    // Predicated region
    $region30: #{tpu_custom_call.1} parent=1 // pred_check
      _
    $region31: #{tpu_custom_call.1} parent=1 // pred_check_branch
      %163 = sbr.rel (0) target = $region33
    $region32: #{tpu_custom_call.1} parent=1 // pred_region
      %164 = dma.done [#allocation4], 256
    $region33: #{tpu_custom_call.1} parent=1 // pred_fallthru
      _
    %165 = vsyncpa [#allocation3], 1
    %166 = vsyncpa [#allocation6], 1
    %167 = vsyncpa [#allocation4], 1

</llo_original>
